<compile_context>
chip_gen: v6e
topology: v6e:2x2x1
jax: 0.10.0
libtpu: 0.0.40
codegen_flags: <defaults>
</compile_context>

<pallas_src>
import jax
import jax.numpy as jnp
from jax.experimental import pallas as pl
from jax.experimental.pallas import tpu as pltpu


def _round_up(a: int, b: int) -> int:
    return (a + b - 1) // b * b


def _cdiv(a: int, b: int) -> int:
    return (a + b - 1) // b


def _vmem_budget_bytes() -> int:
    """~75% of physical VMEM: 48 MiB on v7x, 96 MiB on v5e/v6e (fallback 48 MiB)."""
    physical = 64 * 1024 * 1024  # conservative fallback (v7x-sized)
    try:
        info = pltpu.get_tpu_info()
        physical = int(getattr(info, "vmem_capacity_bytes", physical))
    except Exception:
        pass
    budget = int(physical * 0.75)
    return max(32 * 1024 * 1024, min(budget, 192 * 1024 * 1024))


def _linear_kernel(x_ref, w_ref, b_ref, o_ref):
    # x_ref: (tm, K)  w_ref: (K, tn)  b_ref: (1, tn)  o_ref: (tm, tn)
    acc = jnp.dot(x_ref[...], w_ref[...], preferred_element_type=jnp.float32)
    o_ref[...] = (acc + b_ref[...].astype(jnp.float32)).astype(o_ref.dtype)


def _select_tiles(m, emb, vocab, x_isz, w_isz, o_isz, budget):
    """Pick (tm, tn) honoring the (8,128)/full-dim rule and the VMEM budget."""
    # ---- M (rows) tile ----
    tm_cap = 512 if m >= 2048 else 256
    if m <= tm_cap:
        tm = m                                              # full dim: always legal
    else:
        m_tiles = _cdiv(m, tm_cap)
        tm = min(tm_cap, _round_up(_cdiv(m, m_tiles), 8))   # balanced last tile

    def usage(tm_, tn_):
        # double-buffered x / W / bias / out tiles + f32 matmul temp + slack
        dbl = 2 * (tm_ * emb * x_isz + emb * tn_ * w_isz
                   + tn_ * max(w_isz, 4) + tm_ * tn_ * o_isz)
        return dbl + tm_ * tn_ * 4 + (1 << 20)

    # ---- N (vocab) tile: as wide as the VMEM budget allows ----
    tn_cap = 4096 if m > tm else 2048      # large-M shapes want a fatter resident tile
    per_col = 2 * (emb * w_isz + max(w_isz, 4) + tm * o_isz) + 4 * tm
    avail = budget - (1 << 20) - 2 * tm * emb * x_isz
    tn_fit = max(128, (avail // per_col) // 128 * 128) if avail > per_col else 128
    tn_cap = min(tn_cap, tn_fit)
    if vocab <= tn_cap:
        tn = vocab                                           # full dim: always legal
    else:
        tn = tn_cap
        n_tiles = _cdiv(vocab, tn)
        tn = min(tn, max(128, _round_up(_cdiv(vocab, n_tiles), 128)))  # balance

    # ---- last resort: shrink tm if we still do not fit ----
    while usage(tm, tn) > budget and tm > 128:
        tm = max(128, _round_up(tm // 2, 8))
    return tm, tn


def output_processor(x, weight, bias, *, tm=None, tn=None, out_dtype=None):
    """Compute logits = x @ weight + bias with a Pallas TPU kernel.

    Args:
      x:      (batch, seq, embedding_dim)
      weight: (embedding_dim, vocab_size)   # transposed vs PyTorch nn.Linear.weight
      bias:   (vocab_size,)
      tm, tn: optional explicit tile sizes (auto-selected from VMEM budget if None)
      out_dtype: logits dtype (default: x.dtype; pass jnp.float32 for fp32 logits)
    Returns:
      logits: (batch, seq, vocab_size)
    """
    batch, seq, emb = x.shape
    k, vocab = weight.shape
    assert k == emb, "weight must be (embedding_dim, vocab_size)"

    m = batch * seq
    x2 = x.reshape(m, emb)
    b2 = bias.reshape(1, vocab)
    out_dtype = x.dtype if out_dtype is None else jnp.dtype(out_dtype)

    x_isz = jnp.dtype(x.dtype).itemsize
    w_isz = jnp.dtype(weight.dtype).itemsize
    b_isz = jnp.dtype(bias.dtype).itemsize
    o_isz = jnp.dtype(out_dtype).itemsize
    budget = _vmem_budget_bytes()

    tm_auto, tn_auto = _select_tiles(m, emb, vocab, x_isz, w_isz, o_isz, budget)
    tm_eff = tm_auto if tm is None else min(tm, m)
    tn_eff = tn_auto if tn is None else min(tn, vocab)

    m_tiles = _cdiv(m, tm_eff)
    n_tiles = _cdiv(vocab, tn_eff)

    # ---- grid order: keep the operand with the larger re-read cost resident ----
    x_bytes = m * emb * x_isz
    w_bytes = emb * vocab * w_isz
    weight_resident = (x_bytes * n_tiles + w_bytes) <= (w_bytes * m_tiles + x_bytes)

    if weight_resident:
        # N outer (weight + bias resident across the inner M sweep), M inner.
        grid = (n_tiles, m_tiles)
        x_map = lambda j, i: (i, 0)
        wb_map = lambda j, i: (0, j)
        o_map = lambda j, i: (i, j)
    else:
        # M outer (x resident), N inner — better when x re-reads would dominate.
        grid = (m_tiles, n_tiles)
        x_map = lambda i, j: (i, 0)
        wb_map = lambda i, j: (0, j)
        o_map = lambda i, j: (i, j)

    # ---- advisory cost estimate: count the streamed operand per outer tile ----
    o_bytes = m * vocab * o_isz
    b_bytes = vocab * b_isz
    if weight_resident:
        bytes_accessed = x_bytes * n_tiles + w_bytes + b_bytes + o_bytes
    else:
        bytes_accessed = x_bytes + (w_bytes + b_bytes) * m_tiles + o_bytes
    cost = pl.CostEstimate(
        flops=2 * m * emb * vocab,
        transcendentals=0,
        bytes_accessed=int(bytes_accessed),
    )

    out = pl.pallas_call(
        _linear_kernel,
        out_shape=jax.ShapeDtypeStruct((m, vocab), out_dtype),
        grid_spec=pltpu.PrefetchScalarGridSpec(
            num_scalar_prefetch=0,
            grid=grid,
            in_specs=[
                pl.BlockSpec((tm_eff, emb), x_map),   # x: streams on inner axis
                pl.BlockSpec((emb, tn_eff), wb_map),  # W: resident over inner sweep
                pl.BlockSpec((1, tn_eff), wb_map),    # bias
            ],
            out_specs=pl.BlockSpec((tm_eff, tn_eff), o_map),
        ),
        compiler_params=pltpu.CompilerParams(
            # Pin the megacore / 2-TC split to the OUTER (resident) axis so the
            # read-once operand stays read-once chip-wide on v7x.
            dimension_semantics=("parallel", "arbitrary"),
            vmem_limit_bytes=budget,
        ),
        cost_estimate=cost,
    )(x2, weight, b2)

    return out.reshape(batch, seq, vocab)


def init_output_processor_params(key, embedding_dim, vocab_size, dtype=jnp.float32):
    """Deterministic init mimicking nn.Linear: U(-1/sqrt(in), 1/sqrt(in)).

    Weight is stored as (embedding_dim, vocab_size) == W_pytorch.T.
    """
    kw, kb = jax.random.split(key)
    bound = 1.0 / (embedding_dim ** 0.5)
    weight = jax.random.uniform(kw, (embedding_dim, vocab_size), jnp.float32,
                                minval=-bound, maxval=bound).astype(dtype)
    bias = jax.random.uniform(kb, (vocab_size,), jnp.float32,
                              minval=-bound, maxval=bound).astype(dtype)
    return weight, bias


if __name__ == "__main__":
    key = jax.random.PRNGKey(0)
    kx, kp, kx3, kp3 = jax.random.split(key, 4)

    # --- Test 1: f32, small decode-ish shape, auto tiles ---------------------
    batch, seq, embedding_dim, vocab_size = 2, 8, 32, 256
    x = jax.random.normal(kx, (batch, seq, embedding_dim), jnp.float32)
    weight, bias = init_output_processor_params(kp, embedding_dim, vocab_size)
    logits = jax.block_until_ready(output_processor(x, weight, bias))
    ref = x @ weight + bias
    assert logits.shape == (batch, seq, vocab_size)
    assert logits.dtype == jnp.float32
    assert jnp.allclose(logits, ref, atol=1e-4, rtol=1e-4)

    # --- Test 2: bf16 params/activations, vocab not 128-aligned, f32 logits --
    vocab_odd = 200
    xb = x.astype(jnp.bfloat16)
    wb, bb = init_output_processor_params(kp, embedding_dim, vocab_odd,
                                          dtype=jnp.bfloat16)
    logits_b = jax.block_until_ready(
        output_processor(xb, wb, bb, out_dtype=jnp.float32))
    ref_b = (xb.astype(jnp.float32) @ wb.astype(jnp.float32)
             + bb.astype(jnp.float32))
    assert logits_b.shape == (batch, seq, vocab_odd)
    assert logits_b.dtype == jnp.float32
    assert jnp.allclose(logits_b, ref_b, atol=2e-2, rtol=2e-2)

    # --- Test 3: multi-tile grid with ragged last M and N tiles --------------
    b3, s3, e3, v3 = 2, 150, 64, 2600            # m=300: neither m nor vocab divides
    x3 = jax.random.normal(kx3, (b3, s3, e3), jnp.float32)
    w3, bi3 = init_output_processor_params(kp3, e3, v3)
    logits3 = jax.block_until_ready(output_processor(x3, w3, bi3, tm=128, tn=512))
    ref3 = x3 @ w3 + bi3
    assert logits3.shape == (b3, s3, v3)
    assert jnp.allclose(logits3, ref3, atol=1e-3, rtol=1e-3)

    print("KERNEL_OK")
</pallas_src>

<mosaic_0001>
module attributes {stable_mosaic.version = 11 : i64} {
  func.func @_linear_kernel(%arg0: i32, %arg1: i32, %arg2: memref<16x32xf32, #tpu.memory_space<vmem>>, %arg3: memref<32x256xf32, #tpu.memory_space<vmem>>, %arg4: memref<1x256xf32, #tpu.memory_space<vmem>>, %arg5: memref<16x256xf32, #tpu.memory_space<vmem>>) attributes {dimension_semantics = [#tpu.dimension_semantics<parallel>, #tpu.dimension_semantics<arbitrary>], iteration_bounds = array<i64: 1, 1>, scalar_prefetch = 0 : i64, scratch_operands = 0 : i64, tpu.core_type = #tpu.core_type<tc>, window_params = [{transform_indices = @transform_0, window_bounds = array<i64: 16, 32>}, {transform_indices = @transform_1, window_bounds = array<i64: 32, 256>}, {transform_indices = @transform_2, window_bounds = array<i64: 1, 256>}, {transform_indices = @transform_3, window_bounds = array<i64: 16, 256>}]} {
    %c0 = arith.constant 0 : index
    %c0_0 = arith.constant 0 : index
    %0 = vector.load %arg2[%c0, %c0_0] : memref<16x32xf32, #tpu.memory_space<vmem>>, vector<16x32xf32>
    %c0_1 = arith.constant 0 : index
    %c0_2 = arith.constant 0 : index
    %1 = vector.load %arg3[%c0_1, %c0_2] : memref<32x256xf32, #tpu.memory_space<vmem>>, vector<32x256xf32>
    %cst = arith.constant dense<0.000000e+00> : vector<16x256xf32>
    %2 = tpu.matmul %0, %1, %cst {dimension_numbers = #tpu.dot_dimension_numbers<[1], [0], [0], [1], [0, 0, 1, 1], [], []>} : vector<16x32xf32>, vector<32x256xf32>, vector<16x256xf32> -> vector<16x256xf32>
    %c0_3 = arith.constant 0 : index
    %c0_4 = arith.constant 0 : index
    %3 = vector.load %arg4[%c0_3, %c0_4] : memref<1x256xf32, #tpu.memory_space<vmem>>, vector<1x256xf32>
    %4 = vector.broadcast %3 : vector<1x256xf32> to vector<16x256xf32>
    %5 = arith.addf %2, %4 : vector<16x256xf32>
    %c0_5 = arith.constant 0 : index
    %c0_6 = arith.constant 0 : index
    %6 = vector.load %arg5[%c0_5, %c0_6] : memref<16x256xf32, #tpu.memory_space<vmem>>, vector<16x256xf32>
    tpu.vector_store %arg5[%c0_5, %c0_6], %5 {strides = array<i32>} : memref<16x256xf32, #tpu.memory_space<vmem>>, vector<16x256xf32>,
    return
  }
  func.func @transform_0(%arg0: i32, %arg1: i32) -> (i32, i32) {
    %c0_i32 = arith.constant 0 : i32
    %c0_i32_0 = arith.constant 0 : i32
    return %arg1, %c0_i32 : i32, i32
  }
  func.func @transform_1(%arg0: i32, %arg1: i32) -> (i32, i32) {
    %c0_i32 = arith.constant 0 : i32
    %c0_i32_0 = arith.constant 0 : i32
    return %c0_i32, %arg0 : i32, i32
  }
  func.func @transform_2(%arg0: i32, %arg1: i32) -> (i32, i32) {
    %c0_i32 = arith.constant 0 : i32
    %c0_i32_0 = arith.constant 0 : i32
    return %c0_i32, %arg0 : i32, i32
  }
  func.func @transform_3(%arg0: i32, %arg1: i32) -> (i32, i32) {
    %c0_i32 = arith.constant 0 : i32
    return %arg1, %arg0 : i32, i32
  }
}

</mosaic_0001>

<llo_original>
// kernel: tpu_custom_call.1
$region0: #{tpu_custom_call.1}
  #allocation0 [shape = 'u32[]', space=smem, size = 0x4, offset = 0x4, fixed_abs, tag = 'smem constant byte address 0x4 - core index']
  #allocation1 [shape = 'u32[144,128]{1,0:T(1,128)}', space=vmem, size = 0x12000, scoped, tag = 'internal scratch']
  %s0 = inlined_call_operand.hbm [shape: f32[16,32], index: 0, kind: input, shape index: {}]
  %s1 = inlined_call_operand.hbm [shape: f32[32,256], index: 1, kind: input, shape index: {}]
  %s2 = inlined_call_operand.vmem [shape: f32[1,256], index: 2, kind: input, shape index: {}]
  %s3 = inlined_call_operand.hbm [shape: f32[16,256], index: 3, kind: output, shape index: {}]
  %s4 = sld [smem:[#allocation0]]
  $region30: #{tpu_custom_call.1} parent=0
    _
  %s6 = ssub.s32 1, %s4
  %s7 = scalar_select 0, %s6, %s4
  $region1: #{tpu_custom_call.1} parent=0
    #allocation2 [shape = 'u8[8192]{0}', space=vmem, size = 0x2000, scoped, tag = 'input window, operand 0, single buffered']
    #allocation3 [shape = 's32[1]{0}', space=sflag, size = 0x4, scoped, tag = 'scoped memory for tpu_custom_call.1']
    #allocation4 [shape = 's32[1]{0}', space=sflag, size = 0x4, scoped, tag = 'scoped memory for tpu_custom_call.1']
    #allocation5 [shape = 'u8[32768]{0}', space=vmem, size = 0x8000, scoped, tag = 'input window, operand 1, single buffered']
    #allocation6 [shape = 's32[1]{0}', space=sflag, size = 0x4, scoped, tag = 'scoped memory for tpu_custom_call.1']
    #allocation7 [shape = 'u8[16384]{0}', space=vmem, size = 0x4000, scoped, tag = 'output window, operand 0, single buffered']
    %8 = vsyncpa [#allocation3], 0
    %9 = vsyncpa [#allocation6], 0
    %10 = vsyncpa [#allocation4], 0
    // Predicated region
    $region2: #{tpu_custom_call.1} parent=1 // pred_check
      _
    $region3: #{tpu_custom_call.1} parent=1 // pred_check_branch
      %12 = sbr.rel (0) target = $region5
    $region4: #{tpu_custom_call.1} parent=1 // pred_region
      %s14 = ssub.s32 256, 256
      %15 = vsyncadd [#allocation3], %s14
      %s16 = sshll.u32 [#allocation2], 4
      %s17 = int_to_ptr.vmem [resolvable:$true] %s16
      %22 = dma.hbm_to_vmem [thread:$0]  %s0, 256, %s17, [#allocation3], 128, 128, 8
    $region5: #{tpu_custom_call.1} parent=1 // pred_fallthru
      _
    // Predicated region
    $region6: #{tpu_custom_call.1} parent=1 // pred_check
      _
    $region7: #{tpu_custom_call.1} parent=1 // pred_check_branch
      %24 = sbr.rel (0) target = $region9
    $region8: #{tpu_custom_call.1} parent=1 // pred_region
      %s26 = ssub.s32 1024, 1024
      %27 = vsyncadd [#allocation6], %s26
      %s28 = sshll.u32 [#allocation5], 4
      %s29 = int_to_ptr.vmem [resolvable:$true] %s28
      %34 = dma.hbm_to_vmem [thread:$0]  %s1, 1024, %s29, [#allocation6], 256, 256, 16
    $region9: #{tpu_custom_call.1} parent=1 // pred_fallthru
      _
    // Predicated region
    $region10: #{tpu_custom_call.1} parent=1 // pred_check
      _
    $region11: #{tpu_custom_call.1} parent=1 // pred_check_branch
      %36 = sbr.rel (0) target = $region13
    $region12: #{tpu_custom_call.1} parent=1 // pred_region
      _
    $region13: #{tpu_custom_call.1} parent=1 // pred_fallthru
      _
    // Predicated region
    $region14: #{tpu_custom_call.1} parent=1 // pred_check
      _
    $region15: #{tpu_custom_call.1} parent=1 // pred_check_branch
      %38 = sbr.rel (0) target = $region17
    $region16: #{tpu_custom_call.1} parent=1 // pred_region
      %39 = dma.done [#allocation3], 256
    $region17: #{tpu_custom_call.1} parent=1 // pred_fallthru
      _
    // Predicated region
    $region18: #{tpu_custom_call.1} parent=1 // pred_check
      _
    $region19: #{tpu_custom_call.1} parent=1 // pred_check_branch
      %41 = sbr.rel (0) target = $region21
    $region20: #{tpu_custom_call.1} parent=1 // pred_region
      %42 = dma.done [#allocation6], 1024
    $region21: #{tpu_custom_call.1} parent=1 // pred_fallthru
      _
    %v43 = vld [vmem:[#allocation2] sm:$0xff]
    %v44 = vld [vmem:[#allocation2 + $0x8] sm:$0xff]
    %v45 = vld [vmem:[#allocation5] sm:$0xff]
    %v46 = vld [vmem:[#allocation5 + $0x8] sm:$0xff]
    %v47 = vld [vmem:[#allocation5 + $0x10] sm:$0xff]
    %v48 = vld [vmem:[#allocation5 + $0x18] sm:$0xff]
    %v49 = vld [vmem:[#allocation5 + $0x20] sm:$0xff]
    %v50 = vld [vmem:[#allocation5 + $0x28] sm:$0xff]
    %v51 = vld [vmem:[#allocation5 + $0x30] sm:$0xff]
    %v52 = vld [vmem:[#allocation5 + $0x38] sm:$0xff]
    %v53 = vld [vmem:[%s2] sm:$0x3]
    %v55 = vlaneseq
    %v56 = vshrl.u32 %v55, 7
    %v57 = vsub.s32 0, %v56
    %v58 = vrot.slane %v53, %v57
    %v59 = vlaneseq
    %v60 = vshrl.u32 %v59, 7
    %v61 = vsub.s32 1, %v60
    %v62 = vrot.slane %v53, %v61
    %vm65 = vcmask 261120
    %v67 = vsel %vm65, %v43, 0
    %v70 = vsel %vm65, %v44, 0
    %72 = vmatprep.subr.mxu0 0.0
    %73 = vmatpush1.msra.mxu0 0.0
    %74 = vmatprep.subr.mxu0 0.0
    %75 = vmatpush1.msra.mxu0 0.0
    %76 = vmatprep.subr.mxu0 0.0
    %77 = vmatpush1.msra.mxu0 0.0
    %78 = vmatprep.subr.mxu0 0.0
    %79 = vmatpush1.msra.mxu0 0.0
    %80 = vmatprep.subr.mxu0 0.0
    %81 = vmatpush1.msra.mxu0 0.0
    %82 = vmatprep.subr.mxu0 0.0
    %83 = vmatpush1.msra.mxu0 0.0
    %84 = vmatprep.subr.mxu0 0.0
    %85 = vmatpush1.msra.mxu0 0.0
    %86 = vmatprep.subr.mxu0 0.0
    %87 = vmatpush1.msra.mxu0 0.0
    %88 = vmatprep.subr.mxu0 0.0
    %89 = vmatpush1.msra.mxu0 0.0
    %90 = vmatprep.subr.mxu0 0.0
    %91 = vmatpush1.msra.mxu0 0.0
    %92 = vmatprep.subr.mxu0 0.0
    %93 = vmatpush1.msra.mxu0 0.0
    %94 = vmatprep.subr.mxu0 0.0
    %95 = vmatpush1.msra.mxu0 0.0
    %96 = vmatprep.subr.mxu0 %v52
    %97 = vmatpush1.msra.mxu0 %v51
    %98 = vmatprep.subr.mxu0 %v50
    %99 = vmatpush1.msra.mxu0 %v49
    %100 = vmatprep.subr.mxu0 %v48
    %101 = vmatpush1.msra.mxu0 %v47
    %102 = vmatprep.subr.mxu0 %v46
    %103 = vmatpush1.msra.mxu0 %v45
    %104 = vmatprep.subr.mxu0 0.0
    %105 = vmatpush2.msra.mxu0 0.0
    %106 = vmatprep.subr.mxu0 0.0
    %107 = vmatpush2.msra.mxu0 0.0
    %108 = vmatprep.subr.mxu0 0.0
    %109 = vmatpush2.msra.mxu0 0.0
    %110 = vmatprep.subr.mxu0 0.0
    %111 = vmatpush2.msra.mxu0 0.0
    %112 = vmatprep.subr.mxu0 0.0
    %113 = vmatpush2.msra.mxu0 0.0
    %114 = vmatprep.subr.mxu0 0.0
    %115 = vmatpush2.msra.mxu0 0.0
    %116 = vmatprep.subr.mxu0 0.0
    %117 = vmatpush2.msra.mxu0 0.0
    %118 = vmatprep.subr.mxu0 0.0
    %119 = vmatpush2.msra.mxu0 0.0
    %120 = vmatprep.subr.mxu0 0.0
    %121 = vmatpush2.msra.mxu0 0.0
    %122 = vmatprep.subr.mxu0 0.0
    %123 = vmatpush2.msra.mxu0 0.0
    %124 = vmatprep.subr.mxu0 0.0
    %125 = vmatpush2.msra.mxu0 0.0
    %126 = vmatprep.subr.mxu0 0.0
    %127 = vmatpush2.msra.mxu0 0.0
    %128 = vmatprep.subr.mxu0 0.0
    %129 = vmatpush2.msra.mxu0 0.0
    %130 = vmatprep.subr.mxu0 0.0
    %131 = vmatpush2.msra.mxu0 0.0
    %132 = vmatprep.subr.mxu0 0.0
    %133 = vmatpush2.msra.mxu0 0.0
    %134 = vmatprep.subr.mxu0 0.0
    %135 = vmatpush2.msra.mxu0 0.0
    %136 = vmatprep.mubr.f32.mxu0 0.0
    %137 = vmatmul.mubr.f32.gmra.mxu0 %v67
    %v138 = vpop.f32.mrf.mxu0
    %v139 = vadd.f32 %v58, %v138
    %v140 = vpop.f32.mrf.mxu0
    %v141 = vadd.f32 %v62, %v140
    %142 = vmatprep.mubr.f32.mxu0 0.0
    %143 = vmatmul.mubr.f32.gmra.mxu0 %v70
    %v144 = vpop.f32.mrf.mxu0
    %v145 = vadd.f32 %v58, %v144
    %v146 = vpop.f32.mrf.mxu0
    %v147 = vadd.f32 %v62, %v146
    %148 = vdwg.mxu0
    %149 = vst [vmem:[#allocation7] sm:$0xff] %v139
    %150 = vst [vmem:[#allocation7 + $0x8] sm:$0xff] %v141
    %151 = vst [vmem:[#allocation7 + $0x10] sm:$0xff] %v145
    %152 = vst [vmem:[#allocation7 + $0x18] sm:$0xff] %v147
    // Predicated region
    $region22: #{tpu_custom_call.1} parent=1 // pred_check
      _
    $region23: #{tpu_custom_call.1} parent=1 // pred_check_branch
      %154 = sbr.rel (0) target = $region25
    $region24: #{tpu_custom_call.1} parent=1 // pred_region
      %s156 = ssub.s32 512, 512
      %157 = vsyncadd [#allocation4], %s156
      %s158 = sshll.u32 [#allocation7], 4
      %s159 = int_to_ptr.vmem [resolvable:$true] %s158
      %164 = dma.vmem_to_hbm [thread:$0]  %s159, 512, %s3, [#allocation4], 256, 256, 16
    $region25: #{tpu_custom_call.1} parent=1 // pred_fallthru
      _
    // Predicated region
    $region26: #{tpu_custom_call.1} parent=1 // pred_check
      _
    $region27: #{tpu_custom_call.1} parent=1 // pred_check_branch
      %166 = sbr.rel (0) target = $region29
    $region28: #{tpu_custom_call.1} parent=1 // pred_region
      %167 = dma.done [#allocation4], 512
    $region29: #{tpu_custom_call.1} parent=1 // pred_fallthru
      _
    %168 = vsyncpa [#allocation3], 1
    %169 = vsyncpa [#allocation6], 1
    %170 = vsyncpa [#allocation4], 1

</llo_original>
